<compile_context>
chip_gen: v5e
topology: v5e:2x2
jax: 0.10.0
libtpu: 0.0.40
codegen_flags: <defaults>
</compile_context>

<pallas_src>
import functools

import jax
import jax.numpy as jnp
from jax import lax
from jax.experimental import pallas as pl
from jax.experimental.pallas import tpu as pltpu


DEFAULT_EPSILON = 1e-8


def _vmem_budget_bytes():
    """Scoped-VMEM limit with ~25% headroom for Mosaic internal scratch.

    v7x (64 MiB physical) -> ~48 MiB; v5e/v6e (128 MiB) -> ~96 MiB.
    """
    cap = 64 * 1024 * 1024
    try:
        info = pltpu.get_tpu_info()
        cap = int(getattr(info, "vmem_capacity_bytes", cap)) or cap
    except Exception:
        pass
    return (cap // 4) * 3


_VMEM_BUDGET = _vmem_budget_bytes()
# Bigger tiles where VMEM is plentiful (v5e/v6e), smaller on v7x.
_TARGET_TILE_BYTES = (8 * 1024 * 1024 if _VMEM_BUDGET >= 72 * 1024 * 1024
                      else 4 * 1024 * 1024)


def _pick_div_tile(full, quantum, max_tile):
    """Largest multiple of `quantum` dividing `full`, capped near max_tile.
    If `full` is not a multiple of `quantum` (or <= quantum), use the full dim
    (block_shape equal to the array dim is always legal)."""
    if full % quantum != 0 or full <= quantum:
        return full
    t = min(full, max(quantum, (max_tile // quantum) * quantum))
    while full % t != 0:
        t -= quantum
    return t


# ------------------------- lane-dense layout planning ------------------------

def _plan_transform(B, D):
    """How to present a lane-dense (last dim multiple of 128) working layout."""
    if D % 128 == 0:
        return ("none", 0)
    if D < 128 and 128 % D == 0 and B % (128 // D) == 0:
        return ("repack", 128 // D)          # fold k batch rows into the lanes
    return ("pad", ((D + 127) // 128) * 128)  # zero-pad features


def _transform_x(x, plan):
    kind, p = plan
    B, D = x.shape
    if kind == "repack":
        return x.reshape(B // p, D * p)
    if kind == "pad":
        return jnp.pad(x, ((0, 0), (0, p - D)))
    return x


def _transform_feat(v, plan):
    """(D,) feature vector -> (Dw,) matching the transformed x layout."""
    kind, p = plan
    if kind == "repack":
        return jnp.tile(v, p)
    if kind == "pad":
        return jnp.pad(v, (0, p - v.shape[0]))
    return v


def _fold_feat(vw, plan, D):
    """(1, Dw) per-lane sums -> (D,) per-feature sums."""
    kind, p = plan
    if kind == "repack":
        return vw.reshape(p, D).sum(axis=0)
    if kind == "pad":
        return vw[0, :D]
    return vw.reshape(D)


def _untransform_out(out_w, plan, B, D):
    kind, _ = plan
    if kind == "repack":
        return out_w.reshape(B, D)
    if kind == "pad":
        return out_w[:, :D]
    return out_w


# ----------------------------- training kernel ------------------------------

def _train_kernel(eps, k, d, x_ref, sum_ref, sq_ref, inv_cnt_ref,
                  out_ref, nsum_ref, nsq_ref):
    x = x_ref[...].astype(jnp.float32)                 # (Bw, TILE_D)
    inv_cnt = inv_cnt_ref[0]                           # scalar from SMEM

    # update_statistics: batch-axis reduction for this feature tile.
    ps = jnp.sum(x, axis=0, keepdims=True)             # (1, TILE_D)
    pq = jnp.sum(x * x, axis=0, keepdims=True)
    if k > 1:
        # Lane-dense repack: the TILE_D == k*d lanes hold k batch-groups of the
        # same d features.  Fold-and-broadcast across the groups with log2(k)
        # cyclic lane rotations on the XLU (k is always a power of two here,
        # and the grid has a single feature step so TILE_D == k*d).
        s = d
        while s < k * d:
            ps = ps + pltpu.roll(ps, shift=s, axis=1)
            pq = pq + pltpu.roll(pq, shift=s, axis=1)
            s *= 2

    new_sum = sum_ref[...] + ps
    new_sq = sq_ref[...] + pq
    nsum_ref[...] = new_sum
    nsq_ref[...] = new_sq

    # Normalize with the UPDATED statistics (PyTorch semantics).
    mean = new_sum * inv_cnt
    var = jnp.maximum(new_sq * inv_cnt - mean * mean, 0.0)
    # 1 / max(sqrt(var), eps) == min(rsqrt(var), 1/eps); rsqrt runs on the EUP.
    inv_std = jnp.minimum(lax.rsqrt(var), 1.0 / eps)
    bias = mean * inv_std
    # Per-element cost: one multiply + one subtract (no divide).
    out_ref[...] = (x * inv_std - bias).astype(out_ref.dtype)


# -------------------------- stats-only kernel (pass 1) ------------------------

def _stats_kernel(x_ref, bsum_ref, bsq_ref):
    bi = pl.program_id(1)
    x = x_ref[...].astype(jnp.float32)

    @pl.when(bi == 0)
    def _():
        bsum_ref[...] = jnp.zeros_like(bsum_ref)
        bsq_ref[...] = jnp.zeros_like(bsq_ref)

    bsum_ref[...] += jnp.sum(x, axis=0, keepdims=True)
    bsq_ref[...] += jnp.sum(x * x, axis=0, keepdims=True)


def _batch_stats(xw):
    """Per-lane batch sum / squared-sum of xw: (Bw, Dw) -> two (1, Dw) f32."""
    Bw, Dw = xw.shape
    itemsize = xw.dtype.itemsize
    tile_d = _pick_div_tile(Dw, 128, 512)
    tile_b = _pick_div_tile(Bw, 8, max(8, _TARGET_TILE_BYTES // (2 * tile_d * itemsize)))
    grid = (Dw // tile_d, Bw // tile_b)
    return pl.pallas_call(
        _stats_kernel,
        grid=grid,
        in_specs=[pl.BlockSpec((tile_b, tile_d), lambda di, bi: (bi, di))],
        out_specs=(
            pl.BlockSpec((1, tile_d), lambda di, bi: (0, di)),
            pl.BlockSpec((1, tile_d), lambda di, bi: (0, di)),
        ),
        out_shape=(
            jax.ShapeDtypeStruct((1, Dw), jnp.float32),
            jax.ShapeDtypeStruct((1, Dw), jnp.float32),
        ),
        compiler_params=pltpu.CompilerParams(
            dimension_semantics=("parallel", "arbitrary"),
            vmem_limit_bytes=_VMEM_BUDGET),
        cost_estimate=pl.CostEstimate(
            flops=3 * Bw * Dw, transcendentals=0,
            bytes_accessed=Bw * Dw * itemsize + 2 * Dw * 4),
    )(xw)


# --------------------------- affine kernel (eval / pass 2) --------------------

def _eval_kernel(x_ref, scale_ref, shift_ref, out_ref):
    # Pure affine: 2 VPU ops per element, firmly HBM-bound.
    x = x_ref[...].astype(jnp.float32)
    out_ref[...] = (x * scale_ref[...] - shift_ref[...]).astype(out_ref.dtype)


def _affine_apply(x, scale, shift):
    """out = x * scale - shift with per-feature (D,) scale/shift, lane-dense."""
    B, D = x.shape
    plan = _plan_transform(B, D)
    xw = _transform_x(x, plan)
    Bw, Dw = xw.shape
    scale_w = _transform_feat(scale.astype(jnp.float32), plan).reshape(1, Dw)
    shift_w = _transform_feat(shift.astype(jnp.float32), plan).reshape(1, Dw)

    itemsize = xw.dtype.itemsize
    # Prefer full-row feature tiles (fully contiguous DMAs, scale/shift fetched
    # once per batch tile); tile over batch only.
    tile_d = Dw
    tile_b = _pick_div_tile(Bw, 8, max(8, _TARGET_TILE_BYTES // (4 * tile_d * itemsize)))
    if 4 * tile_b * tile_d * itemsize > _VMEM_BUDGET // 2:
        # Fall back to tiling features too when full rows are too wide.
        tile_d = _pick_div_tile(Dw, 128, 512)
        tile_b = _pick_div_tile(Bw, 8, max(8, _TARGET_TILE_BYTES // (4 * tile_d * itemsize)))
        # TODO(synk): a huge batch that is not a multiple of 8 still falls back
        # to a full-batch tile here; pad the batch if that ever matters.
    grid = (Bw // tile_b, Dw // tile_d)

    out_w = pl.pallas_call(
        _eval_kernel,
        grid=grid,
        in_specs=[
            pl.BlockSpec((tile_b, tile_d), lambda i, j: (i, j)),
            pl.BlockSpec((1, tile_d), lambda i, j: (0, j)),
            pl.BlockSpec((1, tile_d), lambda i, j: (0, j)),
        ],
        out_specs=pl.BlockSpec((tile_b, tile_d), lambda i, j: (i, j)),
        out_shape=jax.ShapeDtypeStruct((Bw, Dw), xw.dtype),
        compiler_params=pltpu.CompilerParams(
            dimension_semantics=("parallel", "parallel"),
            vmem_limit_bytes=_VMEM_BUDGET),
        cost_estimate=pl.CostEstimate(
            flops=2 * Bw * Dw, transcendentals=0,
            bytes_accessed=2 * Bw * Dw * itemsize + 2 * Dw * 4),
    )(xw, scale_w, shift_w)

    return _untransform_out(out_w, plan, B, D)


# ------------------------------ training wrapper -----------------------------

def accumulated_norm_train(x, acc_sum, acc_sq_sum, acc_count, num_acc,
                           epsilon=DEFAULT_EPSILON, force_two_pass=False):
    """Training-mode forward: update statistics, then normalize.

    Returns (out, new_acc_sum, new_acc_sq_sum, new_acc_count, new_num_acc).
    Output dtype == input dtype (bf16 stays bf16; stats always f32).
    """
    B, D = x.shape
    if x.dtype not in (jnp.float32, jnp.bfloat16):
        x = x.astype(jnp.float32)

    # Scalar bookkeeping stays in plain JAX (out of the kernel / VMEM).
    new_count = acc_count.astype(jnp.float32) + jnp.float32(B)        # (1,)
    new_num_acc = num_acc.astype(jnp.float32) + jnp.float32(1.0)      # (1,)
    inv_cnt = 1.0 / jnp.maximum(new_count, 1.0)                       # (1,) -> SMEM

    plan = _plan_transform(B, D)
    xw = _transform_x(x, plan)
    Bw, Dw = xw.shape
    itemsize = xw.dtype.itemsize

    # Fused one-pass needs the full (folded) batch resident per feature tile:
    # double-buffered x + out at the minimum 128-lane tile.
    fused_min_bytes = 4 * Bw * 128 * itemsize
    use_two_pass = force_two_pass or fused_min_bytes > _VMEM_BUDGET // 2

    if use_two_pass:
        # Pass 1: batch-tiled accumulator grid for the statistics.
        bsum_w, bsq_w = _batch_stats(xw)
        new_sum = acc_sum.astype(jnp.float32) + _fold_feat(bsum_w, plan, D)
        new_sq = acc_sq_sum.astype(jnp.float32) + _fold_feat(bsq_w, plan, D)
        # Pass 2: affine normalize with the UPDATED statistics (2-D parallel).
        mean = new_sum * inv_cnt
        var = jnp.maximum(new_sq * inv_cnt - mean * mean, 0.0)
        inv_std = jnp.minimum(lax.rsqrt(var), 1.0 / float(epsilon))
        out = _affine_apply(x, inv_std, mean * inv_std)
        return out, new_sum, new_sq, new_count, new_num_acc

    # Fused single pass.
    k = plan[1] if plan[0] == "repack" else 1
    s_w = _transform_feat(acc_sum.astype(jnp.float32), plan).reshape(1, Dw)
    q_w = _transform_feat(acc_sq_sum.astype(jnp.float32), plan).reshape(1, Dw)

    max_d = _TARGET_TILE_BYTES // max(1, 4 * Bw * itemsize)
    if Dw >= 256:
        max_d = min(max_d, Dw // 2)   # >= 2 feature tiles: both v7x cores busy
    tile_d = _pick_div_tile(Dw, 128, max(128, max_d))
    grid = (Dw // tile_d,)            # repack path always has Dw == 128 => grid 1

    kernel = functools.partial(_train_kernel, float(epsilon), k, D)

    out_w, nsum_w, nsq_w = pl.pallas_call(
        kernel,
        grid=grid,
        in_specs=[
            pl.BlockSpec((Bw, tile_d), lambda i: (0, i)),              # x
            pl.BlockSpec((1, tile_d), lambda i: (0, i)),               # acc_sum
            pl.BlockSpec((1, tile_d), lambda i: (0, i)),               # acc_sq
            pl.BlockSpec(memory_space=pltpu.MemorySpace.SMEM),         # inv_cnt
        ],
        out_specs=(
            pl.BlockSpec((Bw, tile_d), lambda i: (0, i)),              # out
            pl.BlockSpec((1, tile_d), lambda i: (0, i)),               # new_sum
            pl.BlockSpec((1, tile_d), lambda i: (0, i)),               # new_sq
        ),
        out_shape=(
            jax.ShapeDtypeStruct((Bw, Dw), xw.dtype),
            jax.ShapeDtypeStruct((1, Dw), jnp.float32),
            jax.ShapeDtypeStruct((1, Dw), jnp.float32),
        ),
        # In-place running-stat update (true in-place only if caller donates).
        input_output_aliases={1: 1, 2: 2},
        compiler_params=pltpu.CompilerParams(
            dimension_semantics=("parallel",),
            vmem_limit_bytes=_VMEM_BUDGET),
        cost_estimate=pl.CostEstimate(
            flops=7 * Bw * Dw, transcendentals=Dw,
            bytes_accessed=2 * Bw * Dw * itemsize + 4 * Dw * 4),
    )(xw, s_w, q_w, inv_cnt)

    out = _untransform_out(out_w, plan, B, D)
    if plan[0] == "none":
        new_sum, new_sq = nsum_w.reshape(D), nsq_w.reshape(D)
    else:
        new_sum, new_sq = nsum_w[0, :D], nsq_w[0, :D]
    return out, new_sum, new_sq, new_count, new_num_acc


# -------------------------------- eval wrapper --------------------------------

def accumulated_norm_eval(x, acc_sum, acc_sq_sum, acc_count,
                          epsilon=DEFAULT_EPSILON):
    """Eval-mode forward: normalize with frozen accumulated statistics."""
    if x.dtype not in (jnp.float32, jnp.bfloat16):
        x = x.astype(jnp.float32)
    cnt = jnp.maximum(acc_count.astype(jnp.float32), 1.0)              # (1,)
    mean = acc_sum.astype(jnp.float32) / cnt
    var = jnp.maximum(acc_sq_sum.astype(jnp.float32) / cnt - mean * mean, 0.0)
    inv_std = jnp.minimum(lax.rsqrt(var), 1.0 / float(epsilon))
    return _affine_apply(x, inv_std, mean * inv_std)


# ------------------------------ module wrapper --------------------------------

class AccumulatedNormalization:
    """JAX/Pallas port of the PyTorch AccumulatedNormalization module."""

    def __init__(self, accumulator_shape, epsilon=1e-8):
        assert len(accumulator_shape) == 1, "this port handles a 1-D feature shape"
        (d,) = accumulator_shape
        self.epsilon = float(epsilon)
        self.acc_sum = jnp.zeros((d,), jnp.float32)
        self.acc_squared_sum = jnp.zeros((d,), jnp.float32)
        self.acc_count = jnp.zeros((1,), jnp.float32)
        self.num_accumulations = jnp.zeros((1,), jnp.float32)
        self.training = True

    def __call__(self, batch):
        if self.training:
            out, ns, nq, nc, nn = accumulated_norm_train(
                batch, self.acc_sum, self.acc_squared_sum,
                self.acc_count, self.num_accumulations, self.epsilon)
            self.acc_sum, self.acc_squared_sum = ns, nq
            self.acc_count, self.num_accumulations = nc, nn
            return out
        return accumulated_norm_eval(
            batch, self.acc_sum, self.acc_squared_sum, self.acc_count,
            self.epsilon)


# ------------------------------ reference & test ------------------------------

def _reference_forward(x, acc_sum, acc_sq, acc_count, training,
                       eps=DEFAULT_EPSILON):
    """Pure-JAX reference matching the PyTorch module (var clamped at 0)."""
    if training:
        acc_sum = acc_sum + x.sum(axis=0)
        acc_sq = acc_sq + (x ** 2).sum(axis=0)
        acc_count = acc_count + x.shape[0]
    cnt = jnp.maximum(acc_count, 1.0)
    mean = acc_sum / cnt
    var = jnp.maximum(acc_sq / cnt - mean ** 2, 0.0)
    std = jnp.maximum(jnp.sqrt(var), eps)
    return (x - mean) / std, acc_sum, acc_sq, acc_count


if __name__ == "__main__":
    def check_case(B, D, out_atol=1e-4):
        key = jax.random.PRNGKey(0)
        k1, k2 = jax.random.split(key)
        x1 = jax.random.normal(k1, (B, D), jnp.float32) * 2.0 + 0.5
        x2 = jax.random.normal(k2, (B, D), jnp.float32) * 1.5 - 1.0

        mod = AccumulatedNormalization((D,))
        mod.training = True
        y1 = mod(x1)
        y2 = mod(x2)
        mod.training = False
        y3 = mod(x1)
        jax.block_until_ready((y1, y2, y3))

        rs = jnp.zeros((D,)); rq = jnp.zeros((D,)); rc = jnp.zeros((1,))
        r1, rs, rq, rc = _reference_forward(x1, rs, rq, rc, True)
        r2, rs, rq, rc = _reference_forward(x2, rs, rq, rc, True)
        r3, _, _, _ = _reference_forward(x1, rs, rq, rc, False)
        assert jnp.allclose(y1, r1, atol=out_atol), f"train1 mismatch B={B} D={D}"
        assert jnp.allclose(y2, r2, atol=out_atol), f"train2 mismatch B={B} D={D}"
        assert jnp.allclose(y3, r3, atol=out_atol), f"eval mismatch B={B} D={D}"
        assert jnp.allclose(mod.acc_sum, rs, atol=5e-3), f"acc_sum B={B} D={D}"
        assert jnp.allclose(mod.acc_squared_sum, rq, atol=5e-2), f"acc_sq B={B} D={D}"
        assert jnp.allclose(mod.acc_count, jnp.array([2.0 * B])), "count mismatch"
        assert jnp.allclose(mod.num_accumulations, jnp.array([2.0])), "num_acc mismatch"
        return x1

    # D < 128 (lane-dense repack), D multiple of 128 (megacore feature split),
    # D not a 128 multiple (feature padding path).
    x_small = check_case(8, 32)
    check_case(16, 256)
    check_case(4, 96)

    # Two-pass fallback (stats-accumulation kernel + affine), exercised explicitly.
    D = 32
    zs = jnp.zeros((D,), jnp.float32)
    zq = jnp.zeros((D,), jnp.float32)
    zc = jnp.zeros((1,), jnp.float32)
    out_tp, ns, nq, _, _ = accumulated_norm_train(
        x_small, zs, zq, zc, zc, DEFAULT_EPSILON, force_two_pass=True)
    jax.block_until_ready(out_tp)
    r_tp, rs_tp, rq_tp, _ = _reference_forward(x_small, zs, zq, zc, True)
    assert jnp.allclose(out_tp, r_tp, atol=1e-4), "two-pass output mismatch"
    assert jnp.allclose(ns, rs_tp, atol=5e-3), "two-pass acc_sum mismatch"
    assert jnp.allclose(nq, rq_tp, atol=5e-2), "two-pass acc_sq mismatch"

    # bf16 in -> bf16 out (kernel casts per tile; no wrapper upcast).
    x_bf = x_small.astype(jnp.bfloat16)
    out_bf, _, _, _, _ = accumulated_norm_train(x_bf, zs, zq, zc, zc)
    jax.block_until_ready(out_bf)
    r_bf, _, _, _ = _reference_forward(x_bf.astype(jnp.float32), zs, zq, zc, True)
    assert out_bf.dtype == jnp.bfloat16, "bf16 output dtype not preserved"
    assert jnp.allclose(out_bf.astype(jnp.float32), r_bf, atol=0.1), "bf16 mismatch"

    print("KERNEL_OK")
</pallas_src>

<mosaic_0001>
module attributes {stable_mosaic.version = 11 : i64} {
  func.func @_train_kernel(%arg0: i32, %arg1: memref<2x128xf32, #tpu.memory_space<vmem>>, %arg2: memref<1x128xf32, #tpu.memory_space<vmem>>, %arg3: memref<1x128xf32, #tpu.memory_space<vmem>>, %arg4: memref<1xf32, #tpu.memory_space<smem>>, %arg5: memref<2x128xf32, #tpu.memory_space<vmem>>, %arg6: memref<1x128xf32, #tpu.memory_space<vmem>>, %arg7: memref<1x128xf32, #tpu.memory_space<vmem>>) attributes {dimension_semantics = [#tpu.dimension_semantics<parallel>], iteration_bounds = array<i64: 1>, scalar_prefetch = 0 : i64, scratch_operands = 0 : i64, tpu.core_type = #tpu.core_type<tc>, window_params = [{transform_indices = @transform_0, window_bounds = array<i64: 2, 128>}, {transform_indices = @transform_1, window_bounds = array<i64: 1, 128>}, {transform_indices = @transform_2, window_bounds = array<i64: 1, 128>}, {transform_indices = @transform_3, window_bounds = array<i64: 1>}, {transform_indices = @transform_4, window_bounds = array<i64: 2, 128>}, {transform_indices = @transform_5, window_bounds = array<i64: 1, 128>}, {transform_indices = @transform_6, window_bounds = array<i64: 1, 128>}]} {
    %c0 = arith.constant 0 : index
    %c0_0 = arith.constant 0 : index
    %0 = vector.load %arg1[%c0, %c0_0] : memref<2x128xf32, #tpu.memory_space<vmem>>, vector<2x128xf32>
    %c0_1 = arith.constant 0 : index
    %1 = memref.load %arg4[%c0_1] : memref<1xf32, #tpu.memory_space<smem>>
    %cst = arith.constant dense<0.000000e+00> : vector<128xf32>
    %2 = vector.multi_reduction <add>, %0, %cst [0] : vector<2x128xf32> to vector<128xf32>
    %3 = vector.shape_cast %2 : vector<128xf32> to vector<1x128xf32>
    %4 = arith.mulf %0, %0 : vector<2x128xf32>
    %cst_2 = arith.constant dense<0.000000e+00> : vector<128xf32>
    %5 = vector.multi_reduction <add>, %4, %cst_2 [0] : vector<2x128xf32> to vector<128xf32>
    %6 = vector.shape_cast %5 : vector<128xf32> to vector<1x128xf32>
    %c32_i32 = arith.constant 32 : i32
    %7 = tpu.dynamic_rotate %3 by %c32_i32 dim 1 : vector<1x128xf32>, i32 -> vector<1x128xf32>
    %8 = arith.addf %3, %7 : vector<1x128xf32>
    %c32_i32_3 = arith.constant 32 : i32
    %9 = tpu.dynamic_rotate %6 by %c32_i32_3 dim 1 : vector<1x128xf32>, i32 -> vector<1x128xf32>
    %10 = arith.addf %6, %9 : vector<1x128xf32>
    %c64_i32 = arith.constant 64 : i32
    %11 = tpu.dynamic_rotate %8 by %c64_i32 dim 1 : vector<1x128xf32>, i32 -> vector<1x128xf32>
    %12 = arith.addf %8, %11 : vector<1x128xf32>
    %c64_i32_4 = arith.constant 64 : i32
    %13 = tpu.dynamic_rotate %10 by %c64_i32_4 dim 1 : vector<1x128xf32>, i32 -> vector<1x128xf32>
    %14 = arith.addf %10, %13 : vector<1x128xf32>
    %c0_5 = arith.constant 0 : index
    %c0_6 = arith.constant 0 : index
    %15 = vector.load %arg2[%c0_5, %c0_6] : memref<1x128xf32, #tpu.memory_space<vmem>>, vector<1x128xf32>
    %16 = arith.addf %15, %12 : vector<1x128xf32>
    %c0_7 = arith.constant 0 : index
    %c0_8 = arith.constant 0 : index
    %17 = vector.load %arg3[%c0_7, %c0_8] : memref<1x128xf32, #tpu.memory_space<vmem>>, vector<1x128xf32>
    %18 = arith.addf %17, %14 : vector<1x128xf32>
    %c0_9 = arith.constant 0 : index
    %c0_10 = arith.constant 0 : index
    %19 = vector.load %arg6[%c0_9, %c0_10] : memref<1x128xf32, #tpu.memory_space<vmem>>, vector<1x128xf32>
    tpu.vector_store %arg6[%c0_9, %c0_10], %16 {strides = array<i32>} : memref<1x128xf32, #tpu.memory_space<vmem>>, vector<1x128xf32>,
    %c0_11 = arith.constant 0 : index
    %c0_12 = arith.constant 0 : index
    %20 = vector.load %arg7[%c0_11, %c0_12] : memref<1x128xf32, #tpu.memory_space<vmem>>, vector<1x128xf32>
    tpu.vector_store %arg7[%c0_11, %c0_12], %18 {strides = array<i32>} : memref<1x128xf32, #tpu.memory_space<vmem>>, vector<1x128xf32>,
    %21 = vector.broadcast %1 : f32 to vector<1x128xf32>
    %22 = arith.mulf %16, %21 : vector<1x128xf32>
    %23 = vector.broadcast %1 : f32 to vector<1x128xf32>
    %24 = arith.mulf %18, %23 : vector<1x128xf32>
    %25 = arith.mulf %22, %22 : vector<1x128xf32>
    %26 = arith.subf %24, %25 : vector<1x128xf32>
    %cst_13 = arith.constant 0.000000e+00 : f32
    %27 = vector.broadcast %cst_13 : f32 to vector<1x128xf32>
    %28 = arith.maximumf %26, %27 : vector<1x128xf32>
    %29 = math.rsqrt %28 : vector<1x128xf32>
    %cst_14 = arith.constant 1.000000e+08 : f32
    %30 = vector.broadcast %cst_14 : f32 to vector<1x128xf32>
    %31 = arith.minimumf %29, %30 : vector<1x128xf32>
    %32 = arith.mulf %22, %31 : vector<1x128xf32>
    %33 = vector.broadcast %31 : vector<1x128xf32> to vector<2x128xf32>
    %34 = arith.mulf %0, %33 : vector<2x128xf32>
    %35 = vector.broadcast %32 : vector<1x128xf32> to vector<2x128xf32>
    %36 = arith.subf %34, %35 : vector<2x128xf32>
    %c0_15 = arith.constant 0 : index
    %c0_16 = arith.constant 0 : index
    %37 = vector.load %arg5[%c0_15, %c0_16] : memref<2x128xf32, #tpu.memory_space<vmem>>, vector<2x128xf32>
    tpu.vector_store %arg5[%c0_15, %c0_16], %36 {strides = array<i32>} : memref<2x128xf32, #tpu.memory_space<vmem>>, vector<2x128xf32>,
    return
  }
  func.func @transform_0(%arg0: i32) -> (i32, i32) {
    %c0_i32 = arith.constant 0 : i32
    %c0_i32_0 = arith.constant 0 : i32
    return %c0_i32, %arg0 : i32, i32
  }
  func.func @transform_1(%arg0: i32) -> (i32, i32) {
    %c0_i32 = arith.constant 0 : i32
    %c0_i32_0 = arith.constant 0 : i32
    return %c0_i32, %arg0 : i32, i32
  }
  func.func @transform_2(%arg0: i32) -> (i32, i32) {
    %c0_i32 = arith.constant 0 : i32
    %c0_i32_0 = arith.constant 0 : i32
    return %c0_i32, %arg0 : i32, i32
  }
  func.func @transform_3(%arg0: i32) -> i32 {
    %c0_i32 = arith.constant 0 : i32
    %c0_i32_0 = arith.constant 0 : i32
    return %c0_i32 : i32
  }
  func.func @transform_4(%arg0: i32) -> (i32, i32) {
    %c0_i32 = arith.constant 0 : i32
    %c0_i32_0 = arith.constant 0 : i32
    return %c0_i32, %arg0 : i32, i32
  }
  func.func @transform_5(%arg0: i32) -> (i32, i32) {
    %c0_i32 = arith.constant 0 : i32
    %c0_i32_0 = arith.constant 0 : i32
    return %c0_i32, %arg0 : i32, i32
  }
  func.func @transform_6(%arg0: i32) -> (i32, i32) {
    %c0_i32 = arith.constant 0 : i32
    %c0_i32_0 = arith.constant 0 : i32
    return %c0_i32, %arg0 : i32, i32
  }
}

</mosaic_0001>

<llo_original>
// kernel: tpu_custom_call.1
$region0: #{tpu_custom_call.1}
  #allocation0 [shape = 'u32[]', space=smem, size = 0x4, offset = 0x4, fixed_abs, tag = 'smem constant byte address 0x4 - core index']
  #allocation1 [shape = 'u32[72,128]{1,0:T(1,128)}', space=vmem, size = 0x9000, scoped, tag = 'internal scratch']
  #allocation2 [shape = 'f32[1]{0:T(128)S(6)}', space=smem, size = 0x200, scoped, tag = 'scoped memory for tpu_custom_call.1']
  %s0 = inlined_call_operand.vmem [shape: f32[2,128], index: 0, kind: input, shape index: {}]
  %s1 = inlined_call_operand.hbm [shape: f32[1,128], index: 1, kind: input, shape index: {}, may-alias: {1,5}]
  %s2 = inlined_call_operand.hbm [shape: f32[1,128], index: 2, kind: input, shape index: {}, may-alias: {2,6}]
  %s3 = inlined_call_operand.<no memory space> [shape: f32[1], index: 3, kind: input, shape index: {}]
  %s4 = inlined_call_operand.hbm [shape: f32[2,128], index: 4, kind: output, shape index: {0}]
  %s5 = inlined_call_operand.hbm [shape: f32[1,128], index: 5, kind: output, shape index: {1}, may-alias: {1,5}]
  %s6 = inlined_call_operand.hbm [shape: f32[1,128], index: 6, kind: output, shape index: {2}, may-alias: {2,6}]
  %7 = xla_tuple %s4, %s5, %s6
  %s8 = sld [smem:[#allocation0]]
  $region50: #{tpu_custom_call.1} parent=0
    _
  %s10 = ssub.s32 1, %s8
  %s11 = scalar_select 0, %s10, %s8
  %12 = sst [smem:[#allocation2]] %s3
  $region1: #{tpu_custom_call.1} parent=0
    #allocation3 [shape = 'u8[512]{0}', space=vmem, size = 0x400, scoped, tag = 'input window, operand 1, single buffered']
    #allocation4 [shape = 's32[1]{0}', space=sflag, size = 0x4, scoped, tag = 'scoped memory for tpu_custom_call.1']
    #allocation5 [shape = 's32[1]{0}', space=sflag, size = 0x4, scoped, tag = 'scoped memory for tpu_custom_call.1']
    #allocation6 [shape = 'u8[512]{0}', space=vmem, size = 0x400, scoped, tag = 'input window, operand 2, single buffered']
    #allocation7 [shape = 's32[1]{0}', space=sflag, size = 0x4, scoped, tag = 'scoped memory for tpu_custom_call.1']
    #allocation8 [shape = 'u8[1024]{0}', space=vmem, size = 0x400, scoped, tag = 'output window, operand 0, single buffered']
    #allocation9 [shape = 'u8[512]{0}', space=vmem, size = 0x400, scoped, tag = 'output window, operand 1, single buffered']
    #allocation10 [shape = 's32[1]{0}', space=sflag, size = 0x4, scoped, tag = 'scoped memory for tpu_custom_call.1']
    #allocation11 [shape = 'u8[512]{0}', space=vmem, size = 0x400, scoped, tag = 'output window, operand 2, single buffered']
    %13 = vsyncpa [#allocation4], 0
    %14 = vsyncpa [#allocation7], 0
    %15 = vsyncpa [#allocation5], 0
    %16 = vsyncpa [#allocation10], 0
    // Predicated region
    $region2: #{tpu_custom_call.1} parent=1 // pred_check
      _
    $region3: #{tpu_custom_call.1} parent=1 // pred_check_branch
      %18 = sbr.rel (0) target = $region5
    $region4: #{tpu_custom_call.1} parent=1 // pred_region
      _
    $region5: #{tpu_custom_call.1} parent=1 // pred_fallthru
      _
    // Predicated region
    $region6: #{tpu_custom_call.1} parent=1 // pred_check
      _
    $region7: #{tpu_custom_call.1} parent=1 // pred_check_branch
      %20 = sbr.rel (0) target = $region9
    $region8: #{tpu_custom_call.1} parent=1 // pred_region
      %22 = vsyncadd [#allocation4], 0
      %s24 = sshll.u32 %s1, 4
      %s25 = int_to_ptr.hbm [resolvable:$true] %s24
      %s26 = sshll.u32 [#allocation3], 4
      %s27 = int_to_ptr.vmem [resolvable:$true] %s26
      %29 = dma.hbm_to_vmem [thread:$0]  %s25, 16, %s27, [#allocation4]
    $region9: #{tpu_custom_call.1} parent=1 // pred_fallthru
      _
    // Predicated region
    $region10: #{tpu_custom_call.1} parent=1 // pred_check
      _
    $region11: #{tpu_custom_call.1} parent=1 // pred_check_branch
      %31 = sbr.rel (0) target = $region13
    $region12: #{tpu_custom_call.1} parent=1 // pred_region
      %33 = vsyncadd [#allocation7], 0
      %s35 = sshll.u32 %s2, 4
      %s36 = int_to_ptr.hbm [resolvable:$true] %s35
      %s37 = sshll.u32 [#allocation6], 4
      %s38 = int_to_ptr.vmem [resolvable:$true] %s37
      %40 = dma.hbm_to_vmem [thread:$0]  %s36, 16, %s38, [#allocation7]
    $region13: #{tpu_custom_call.1} parent=1 // pred_fallthru
      _
    // Predicated region
    $region14: #{tpu_custom_call.1} parent=1 // pred_check
      _
    $region15: #{tpu_custom_call.1} parent=1 // pred_check_branch
      %42 = sbr.rel (0) target = $region17
    $region16: #{tpu_custom_call.1} parent=1 // pred_region
      _
    $region17: #{tpu_custom_call.1} parent=1 // pred_fallthru
      _
    // Predicated region
    $region18: #{tpu_custom_call.1} parent=1 // pred_check
      _
    $region19: #{tpu_custom_call.1} parent=1 // pred_check_branch
      %44 = sbr.rel (0) target = $region21
    $region20: #{tpu_custom_call.1} parent=1 // pred_region
      %46 = dma.done [#allocation4], 16
    $region21: #{tpu_custom_call.1} parent=1 // pred_fallthru
      _
    // Predicated region
    $region22: #{tpu_custom_call.1} parent=1 // pred_check
      _
    $region23: #{tpu_custom_call.1} parent=1 // pred_check_branch
      %48 = sbr.rel (0) target = $region25
    $region24: #{tpu_custom_call.1} parent=1 // pred_region
      %50 = dma.done [#allocation7], 16
    $region25: #{tpu_custom_call.1} parent=1 // pred_fallthru
      _
    %v51 = vld [vmem:[%s0] sm:$0x3]
    %s52 = sld [smem:[#allocation2]]
    %vm53 = vcmask 1041408
    %v54 = vsel %vm53, %v51, 0.0
    %v55 = vrot.slane %v54, 4
    %v56 = vadd.f32 %v54, %v55
    %v57 = vrot.slane %v56, 2
    %v58 = vadd.f32 %v56, %v57
    %v59 = vrot.slane %v58, 1
    %v60 = vadd.f32 %v58, %v59
    %v61 = vmul.f32 %v51, %v51
    %v62 = vsel %vm53, %v61, 0.0
    %v63 = vrot.slane %v62, 4
    %v64 = vadd.f32 %v62, %v63
    %v65 = vrot.slane %v64, 2
    %v66 = vadd.f32 %v64, %v65
    %v67 = vrot.slane %v66, 1
    %v68 = vadd.f32 %v66, %v67
    %69 = vrot.lane.b32.xlu0 %v60, 32
    %v70 = vpop.permute.xlu0 %69
    %v71 = vadd.f32 %v60, %v70
    %72 = vrot.lane.b32.xlu0 %v68, 32
    %v73 = vpop.permute.xlu0 %72
    %v74 = vadd.f32 %v68, %v73
    %75 = vrot.lane.b32.xlu0 %v71, 64
    %v76 = vpop.permute.xlu0 %75
    %v77 = vadd.f32 %v71, %v76
    %78 = vrot.lane.b32.xlu0 %v74, 64
    %v79 = vpop.permute.xlu0 %78
    %v80 = vadd.f32 %v74, %v79
    %v81 = vld [vmem:[#allocation3] sm:$0x1]
    %v82 = vadd.f32 %v81, %v77
    %v83 = vld [vmem:[#allocation6] sm:$0x1]
    %v84 = vadd.f32 %v83, %v80
    %85 = vst [vmem:[#allocation9] sm:$0x1] %v82
    %86 = vst [vmem:[#allocation11] sm:$0x1] %v84
    %v87 = vstv %s52
    %v88 = vmul.f32 %v82, %v87
    %v89 = vmul.f32 %v84, %v87
    %v90 = vmul.f32 %v88, %v88
    %v91 = vsub.f32 %v89, %v90
    %v92 = vmax.f32 %v91, 0.0
    %v93 = vrsqrt.pop %v92
    %v94 = vmul.f32 %v93, %v92
    %v95 = vmul.f32 %v94, %v93
    %v96 = vmul.f32 0.5, %v95
    %v97 = vsub.f32 1.5, %v96
    %v98 = vmul.f32 %v93, %v97
    %vm99 = vweird.f32 %v92
    %vm100 = vweird.f32 %v93
    %vm101 = vmor %vm99, %vm100
    %v102 = vsel %vm101, %v93, %v98
    %v103 = vmin.f32 %v102, 1e+08
    %v104 = vmul.f32 %v88, %v103
    %v106 = vperm.slane %v103, 0
    %v108 = vmul.f32 %v51, %v106
    %v110 = vperm.slane %v104, 0
    %v112 = vsub.f32 %v108, %v110
    %113 = vst [vmem:[#allocation8] sm:$0x3] %v112
    // Predicated region
    $region26: #{tpu_custom_call.1} parent=1 // pred_check
      _
    $region27: #{tpu_custom_call.1} parent=1 // pred_check_branch
      %115 = sbr.rel (0) target = $region29
    $region28: #{tpu_custom_call.1} parent=1 // pred_region
      %117 = vsyncadd [#allocation5], 0
      %s119 = sshll.u32 [#allocation8], 4
      %s120 = int_to_ptr.vmem [resolvable:$true] %s119
      %s121 = sshll.u32 %s4, 4
      %s122 = int_to_ptr.hbm [resolvable:$true] %s121
      %124 = dma.vmem_to_hbm [thread:$0]  %s120, 32, %s122, [#allocation5]
    $region29: #{tpu_custom_call.1} parent=1 // pred_fallthru
      _
    // Predicated region
    $region30: #{tpu_custom_call.1} parent=1 // pred_check
      _
    $region31: #{tpu_custom_call.1} parent=1 // pred_check_branch
      %126 = sbr.rel (0) target = $region33
    $region32: #{tpu_custom_call.1} parent=1 // pred_region
      %128 = vsyncadd [#allocation10], 0
      %s130 = sshll.u32 [#allocation9], 4
      %s131 = int_to_ptr.vmem [resolvable:$true] %s130
      %s132 = sshll.u32 %s5, 4
      %s133 = int_to_ptr.hbm [resolvable:$true] %s132
      %135 = dma.vmem_to_hbm [thread:$0]  %s131, 16, %s133, [#allocation10]
    $region33: #{tpu_custom_call.1} parent=1 // pred_fallthru
      _
    // Predicated region
    $region34: #{tpu_custom_call.1} parent=1 // pred_check
      _
    $region35: #{tpu_custom_call.1} parent=1 // pred_check_branch
      %137 = sbr.rel (0) target = $region37
    $region36: #{tpu_custom_call.1} parent=1 // pred_region
      %139 = vsyncadd [#allocation10], 0
      %s141 = sshll.u32 [#allocation11], 4
      %s142 = int_to_ptr.vmem [resolvable:$true] %s141
      %s143 = sshll.u32 %s6, 4
      %s144 = int_to_ptr.hbm [resolvable:$true] %s143
      %146 = dma.vmem_to_hbm [thread:$0]  %s142, 16, %s144, [#allocation10]
    $region37: #{tpu_custom_call.1} parent=1 // pred_fallthru
      _
    // Predicated region
    $region38: #{tpu_custom_call.1} parent=1 // pred_check
      _
    $region39: #{tpu_custom_call.1} parent=1 // pred_check_branch
      %148 = sbr.rel (0) target = $region41
    $region40: #{tpu_custom_call.1} parent=1 // pred_region
      %150 = dma.done [#allocation5], 32
    $region41: #{tpu_custom_call.1} parent=1 // pred_fallthru
      _
    // Predicated region
    $region42: #{tpu_custom_call.1} parent=1 // pred_check
      _
    $region43: #{tpu_custom_call.1} parent=1 // pred_check_branch
      %152 = sbr.rel (0) target = $region45
    $region44: #{tpu_custom_call.1} parent=1 // pred_region
      %154 = dma.done [#allocation10], 16
    $region45: #{tpu_custom_call.1} parent=1 // pred_fallthru
      _
    // Predicated region
    $region46: #{tpu_custom_call.1} parent=1 // pred_check
      _
    $region47: #{tpu_custom_call.1} parent=1 // pred_check_branch
      %156 = sbr.rel (0) target = $region49
    $region48: #{tpu_custom_call.1} parent=1 // pred_region
      %158 = dma.done [#allocation10], 16
    $region49: #{tpu_custom_call.1} parent=1 // pred_fallthru
      _
    %159 = vsyncpa [#allocation4], 1
    %160 = vsyncpa [#allocation7], 1
    %161 = vsyncpa [#allocation5], 1
    %162 = vsyncpa [#allocation10], 1

</llo_original>
